<compile_context>
chip_gen: v6e
topology: v6e:2x2x1
jax: 0.10.0
libtpu: 0.0.40
codegen_flags: <defaults>
</compile_context>

<pallas_src>
import functools
import math

import jax
import jax.numpy as jnp
from jax.experimental import pallas as pl
from jax.experimental.pallas import tpu as pltpu


def _round_up(x, m):
    return (x + m - 1) // m * m


# ----------------------------------------------------------------------------
# Kernel: one (batch, flat-spatial-tile) grid step
# ----------------------------------------------------------------------------
def _styled_conv_kernel(wfold_ref, x_ref, noise_ref, abias_ref, nw_ref,
                        out_ref, tail_ref, *, k, wp, halo, halo_pad,
                        neg_slope, act_gain):
    """Block shapes seen by the kernel:
      wfold_ref : (1, C_out, KK*C_in_p)  bf16  per-batch folded/demodulated weights
      x_ref     : (1, C_in_p, thw)       bf16  flat padded-input tile
      noise_ref : (1, 1, thw)            f32
      abias_ref : (C_out, 1)             f32
      nw_ref    : (1, 1)                 f32 (SMEM)
      out_ref   : (1, C_out, thw)
      tail_ref  : (C_in_p, halo_pad)     bf16 VMEM (carried across spatial tiles)
    """
    s = pl.program_id(1)

    # Reset the 1-D halo at the start of every batch's spatial sweep.
    @pl.when(s == 0)
    def _reset_tail():
        tail_ref[...] = jnp.zeros_like(tail_ref)

    cur = x_ref[0]                                           # (C_in_p, thw)
    thw = cur.shape[1]

    # window[:, i] == x_flat[:, q0 - halo_pad + i]  (128-aligned concat boundary)
    window = jnp.concatenate([tail_ref[...], cur], axis=1)   # (C_in_p, halo_pad+thw)

    # Conv taps are pure shifts on the flattened padded grid; fold all K*K taps
    # into a single MXU contraction of size KK*C_in_p (review item 1).
    base = halo_pad - halo
    taps = [window[:, base + dy * wp + dx: base + dy * wp + dx + thw]
            for dy in range(k) for dx in range(k)]
    rhs = jnp.concatenate(taps, axis=0)                      # (KK*C_in_p, thw) bf16

    acc = jnp.dot(wfold_ref[0], rhs,
                  preferred_element_type=jnp.float32)        # (C_out, thw) f32

    # Carry the last halo_pad columns of this tile for the next spatial step.
    tail_ref[...] = cur[:, thw - halo_pad:]

    # Noise injection + fused bias + leaky ReLU: gain * leaky_relu(x + b, 0.2).
    acc = acc + nw_ref[0, 0] * noise_ref[0].astype(jnp.float32)
    y = acc + abias_ref[...]
    y = jnp.where(y >= 0.0, y, neg_slope * y) * act_gain
    out_ref[0] = y.astype(out_ref.dtype)


# ----------------------------------------------------------------------------
# Tile / VMEM sizing
# ----------------------------------------------------------------------------
def _vmem_bytes_per_step(thw, c_in_p, c_out, kk, halo_pad, out_bytes):
    bf = 2
    stream = 2 * (c_in_p * thw * bf            # x tile            (double-buffered)
                  + thw * 4                    # noise tile
                  + c_out * thw * out_bytes    # output tile
                  + c_out * kk * c_in_p * bf)  # folded weights
    work = (kk * c_in_p * thw * bf             # concatenated RHS
            + (halo_pad + thw) * c_in_p * bf   # halo window value
            + 2 * c_out * thw * 4)             # f32 accumulator + epilogue temps
    return stream + work + c_in_p * halo_pad * bf


def _pick_spatial_tile(flat_len, halo_pad, c_in_p, c_out, kk, out_bytes, budget):
    """Largest lane-dense flat tile (>= halo_pad) that fits the VMEM budget."""
    cap = _round_up(flat_len, 128)
    thw = halo_pad
    for cand in (256, 512, 1024, 2048, 4096, 8192):
        if cand < halo_pad or cand > cap:
            continue
        if _vmem_bytes_per_step(cand, c_in_p, c_out, kk, halo_pad, out_bytes) <= budget:
            thw = max(thw, cand)
    return thw


# ----------------------------------------------------------------------------
# Wrapper
# ----------------------------------------------------------------------------
def styled_conv_forward(x, style, noise, conv_weight, mod_weight, mod_bias,
                        act_bias, noise_weight, demodulate=True):
    """StyledConv.forward (upsample=False). Returns (out, style_mod).

    x:            (B, C_in, H, W)       style:        (B, style_dim)
    noise:        (B, 1, H, W)          conv_weight:  (C_out, C_in, K, K)
    mod_weight:   (C_in, style_dim)     mod_bias:     (C_in,)
    act_bias:     (C_out,)              noise_weight: scalar
    """
    B, C_in, H, W = x.shape
    C_out, _, K, _ = conv_weight.shape
    S = style.shape[1]
    p = K // 2
    Hp, Wp = H + 2 * p, W + 2 * p
    KK = K * K
    flat = Hp * Wp
    halo = (K - 1) * (Wp + 1)                  # largest flattened tap shift
    halo_pad = _round_up(max(halo, 1), 128)    # lane-aligned carried tail

    in_dtype = jnp.bfloat16                    # MXU operand dtype (f32 accumulate)
    C_in_p = _round_up(C_in, 16)               # keep bf16 sublane packing aligned

    # ---- per-batch modulation / demodulation (tiny; hoisted out of the grid) --
    mod_scale = 1.0 / math.sqrt(S)                       # EqualLinear scale (lr_mul=1)
    conv_scale = 1.0 / math.sqrt(C_in * K * K)           # ModulatedConv2d scale
    mod = (style.astype(jnp.float32) @ (mod_weight.astype(jnp.float32) * mod_scale).T
           + mod_bias.astype(jnp.float32))               # (B, C_in)
    w = conv_scale * conv_weight.astype(jnp.float32)[None] * mod[:, None, :, None, None]
    if demodulate:
        dnorm = jax.lax.rsqrt(jnp.sum(w * w, axis=(2, 3, 4), keepdims=True) + 1e-8)
        w = w * dnorm                                    # (B, C_out, C_in, K, K)
    if C_in_p != C_in:
        w = jnp.pad(w, ((0, 0), (0, 0), (0, C_in_p - C_in), (0, 0), (0, 0)))
    # Fold to (B, C_out, KK*C_in_p), tap-major (dy, dx) to match the kernel RHS.
    w_fold = jnp.transpose(w.reshape(B, C_out, C_in_p, KK), (0, 1, 3, 2))
    w_fold = w_fold.reshape(B, C_out, KK * C_in_p).astype(in_dtype)

    # ---- generation-aware VMEM budget / tile size ------------------------------
    try:
        vmem_cap = int(pltpu.get_tpu_info().vmem_capacity_bytes)
    except Exception:
        vmem_cap = 64 * 1024 * 1024            # conservative (v7x-sized) fallback
    budget = min(vmem_cap // 2, 48 * 1024 * 1024)
    vmem_limit = int(min(vmem_cap, budget + 16 * 1024 * 1024))
    out_bytes = jnp.dtype(x.dtype).itemsize
    thw = _pick_spatial_tile(flat, halo_pad, C_in_p, C_out, KK, out_bytes, budget)
    n_flat = _round_up(flat, thw)
    n_s = n_flat // thw

    # ---- flatten the zero-padded input: conv taps become 1-D shifts -----------
    x_pad = jnp.pad(x, ((0, 0), (0, C_in_p - C_in), (p, p), (p, p)))
    x_flat = x_pad.reshape(B, C_in_p, flat).astype(in_dtype)
    x_flat = jnp.pad(x_flat, ((0, 0), (0, 0), (0, n_flat - flat)))

    # Output lives on the padded flat grid shifted by `halo`; align noise to it.
    noise_pad = jnp.pad(noise.astype(jnp.float32),
                        ((0, 0), (0, 0), (K - 1, 0), (K - 1, 0)))    # (B, 1, Hp, Wp)
    noise_flat = jnp.pad(noise_pad.reshape(B, 1, flat),
                         ((0, 0), (0, 0), (0, n_flat - flat)))

    abias = act_bias.reshape(C_out, 1).astype(jnp.float32)
    nw = jnp.asarray(noise_weight, jnp.float32).reshape(1, 1)

    kernel = functools.partial(_styled_conv_kernel, k=K, wp=Wp, halo=halo,
                               halo_pad=halo_pad, neg_slope=0.2,
                               act_gain=math.sqrt(2.0))

    flops = 2 * B * C_out * KK * C_in_p * n_flat + 6 * B * C_out * n_flat
    bytes_accessed = B * (C_in_p * n_flat * 2 + n_flat * 4
                          + C_out * n_flat * out_bytes + C_out * KK * C_in_p * 2)

    out2 = pl.pallas_call(
        kernel,
        out_shape=jax.ShapeDtypeStruct((B, C_out, n_flat), x.dtype),
        grid_spec=pltpu.PrefetchScalarGridSpec(
            num_scalar_prefetch=0,
            grid=(B, n_s),
            in_specs=[
                pl.BlockSpec((1, C_out, KK * C_in_p), lambda b, s: (b, 0, 0)),  # weights
                pl.BlockSpec((1, C_in_p, thw), lambda b, s: (b, 0, s)),         # x tile
                pl.BlockSpec((1, 1, thw), lambda b, s: (b, 0, s)),              # noise
                pl.BlockSpec((C_out, 1), lambda b, s: (0, 0)),                  # act bias
                pl.BlockSpec(memory_space=pltpu.MemorySpace.SMEM),              # noise wt
            ],
            out_specs=pl.BlockSpec((1, C_out, thw), lambda b, s: (b, 0, s)),
            scratch_shapes=[pltpu.VMEM((C_in_p, halo_pad), in_dtype)],
        ),
        compiler_params=pltpu.CompilerParams(
            # Spatial axis stays "arbitrary": the carried halo tail is sequential
            # state.  Batch axis shards across TensorCores.
            dimension_semantics=("parallel", "arbitrary"),
            vmem_limit_bytes=vmem_limit,
        ),
        cost_estimate=pl.CostEstimate(flops=int(flops), transcendentals=0,
                                      bytes_accessed=int(bytes_accessed)),
    )(w_fold, x_flat, noise_flat, abias, nw)

    # Valid outputs sit at flat index (h + K-1)*Wp + (w + K-1) on the padded grid.
    out = out2[:, :, :flat].reshape(B, C_out, Hp, Wp)[:, :, K - 1:K - 1 + H,
                                                      K - 1:K - 1 + W]
    return out, mod.reshape(B, 1, C_in, 1, 1)


# ----------------------------------------------------------------------------
# Pure-JAX reference (mirrors the PyTorch StyledConv forward)
# ----------------------------------------------------------------------------
def _ref_styled_conv(x, style, noise, conv_weight, mod_weight, mod_bias,
                     act_bias, noise_weight, demodulate=True):
    B, C_in, H, W = x.shape
    C_out, _, K, _ = conv_weight.shape
    S = style.shape[1]
    mod = style @ (mod_weight * (1.0 / math.sqrt(S))).T + mod_bias            # (B, C_in)
    w = (1.0 / math.sqrt(C_in * K * K)) * conv_weight[None] * mod[:, None, :, None, None]
    if demodulate:
        demod = jax.lax.rsqrt(jnp.sum(w * w, axis=(2, 3, 4)) + 1e-8)
        w = w * demod[:, :, None, None, None]

    def conv_one(xi, wi):
        return jax.lax.conv_general_dilated(
            xi[None], wi, window_strides=(1, 1),
            padding=[(K // 2, K // 2)] * 2,
            dimension_numbers=('NCHW', 'OIHW', 'NCHW'),
            precision=jax.lax.Precision.HIGHEST)[0]

    out = jax.vmap(conv_one)(x, w)                                            # (B, C_out, H, W)
    out = out + noise_weight * noise
    z = out + act_bias[None, :, None, None]
    out = jnp.where(z >= 0, z, 0.2 * z) * math.sqrt(2.0)
    return out, mod.reshape(B, 1, C_in, 1, 1)


# ----------------------------------------------------------------------------
if __name__ == "__main__":
    key = jax.random.PRNGKey(0)
    k1, k2, k3, k4, k5, k6 = jax.random.split(key, 6)

    B, C_in, C_out, H, W, K, S = 2, 4, 4, 16, 16, 3, 8

    x = jax.random.normal(k1, (B, C_in, H, W), dtype=jnp.float32)
    style = jax.random.normal(k2, (B, S), dtype=jnp.float32)
    noise = jax.random.normal(k3, (B, 1, H, W), dtype=jnp.float32)
    conv_weight = jax.random.normal(k4, (C_out, C_in, K, K), dtype=jnp.float32)
    mod_weight = jax.random.normal(k5, (C_in, S), dtype=jnp.float32)
    mod_bias = jnp.ones((C_in,), jnp.float32)                 # EqualLinear bias_init=1
    act_bias = 0.1 * jax.random.normal(k6, (C_out,), dtype=jnp.float32)
    noise_weight = jnp.float32(0.1)

    out, smod = styled_conv_forward(x, style, noise, conv_weight, mod_weight,
                                    mod_bias, act_bias, noise_weight)
    jax.block_until_ready(out)
    jax.block_until_ready(smod)

    ref_out, ref_smod = _ref_styled_conv(x, style, noise, conv_weight, mod_weight,
                                         mod_bias, act_bias, noise_weight)

    assert out.shape == (B, C_out, H, W) and out.dtype == x.dtype
    assert smod.shape == (B, 1, C_in, 1, 1)
    assert jnp.allclose(smod, ref_smod, atol=1e-3, rtol=1e-3), "style modulation mismatch"
    # bf16 MXU operands (f32 accumulation) -> slightly looser tolerance.
    assert jnp.allclose(out, ref_out, atol=3e-2, rtol=2e-2), "styled conv output mismatch"

    print("KERNEL_OK")
</pallas_src>

<mosaic_0001>
module attributes {stable_mosaic.version = 11 : i64} {
  func.func @_styled_conv_kernel(%arg0: i32, %arg1: i32, %arg2: memref<1x4x144xbf16, #tpu.memory_space<vmem>>, %arg3: memref<1x16x256xbf16, #tpu.memory_space<vmem>>, %arg4: memref<1x1x256xf32, #tpu.memory_space<vmem>>, %arg5: memref<4x1xf32, #tpu.memory_space<vmem>>, %arg6: memref<1x1xf32, #tpu.memory_space<smem>>, %arg7: memref<1x4x256xf32, #tpu.memory_space<vmem>>, %arg8: memref<16x128xbf16, #tpu.memory_space<vmem>>) attributes {dimension_semantics = [#tpu.dimension_semantics<parallel>, #tpu.dimension_semantics<arbitrary>], iteration_bounds = array<i64: 2, 2>, scalar_prefetch = 0 : i64, scratch_operands = 1 : i64, tpu.core_type = #tpu.core_type<tc>, window_params = [{transform_indices = @transform_0, window_bounds = array<i64: 1, 4, 144>}, {transform_indices = @transform_1, window_bounds = array<i64: 1, 16, 256>}, {transform_indices = @transform_2, window_bounds = array<i64: 1, 1, 256>}, {pipeline_mode = #tpu.pipeline_mode<synchronous>, transform_indices = @transform_3, window_bounds = array<i64: 4, 1>}, {transform_indices = @transform_4, window_bounds = array<i64: 1, 1>}, {transform_indices = @transform_5, window_bounds = array<i64: 1, 4, 256>}]} {
    %c0_i32 = arith.constant 0 : i32
    %0 = arith.cmpi eq, %arg1, %c0_i32 : i32
    %1 = arith.extui %0 : i1 to i32
    %c0_i32_0 = arith.constant 0 : i32
    %2 = arith.cmpi ne, %1, %c0_i32_0 : i32
    scf.if %2 {
      %cst_23 = arith.constant 0.000000e+00 : bf16
      %42 = vector.broadcast %cst_23 : bf16 to vector<16x128xbf16>
      %c0_24 = arith.constant 0 : index
      %c0_25 = arith.constant 0 : index
      %43 = vector.load %arg8[%c0_24, %c0_25] : memref<16x128xbf16, #tpu.memory_space<vmem>>, vector<16x128xbf16>
      tpu.vector_store %arg8[%c0_24, %c0_25], %42 {strides = array<i32>} : memref<16x128xbf16, #tpu.memory_space<vmem>>, vector<16x128xbf16>,
    } else {
    }
    %c0 = arith.constant 0 : index
    %c0_1 = arith.constant 0 : index
    %c0_2 = arith.constant 0 : index
    %3 = vector.load %arg3[%c0, %c0_1, %c0_2] : memref<1x16x256xbf16, #tpu.memory_space<vmem>>, vector<1x16x256xbf16>
    %4 = vector.shape_cast %3 : vector<1x16x256xbf16> to vector<16x256xbf16>
    %c0_3 = arith.constant 0 : index
    %c0_4 = arith.constant 0 : index
    %5 = vector.load %arg8[%c0_3, %c0_4] : memref<16x128xbf16, #tpu.memory_space<vmem>>, vector<16x128xbf16>
    %6 = tpu.concatenate %5, %4 in 1 : vector<16x128xbf16>, vector<16x256xbf16> -> vector<16x384xbf16>
    %7 = vector.extract_strided_slice %6 {offsets = [0, 90], sizes = [16, 256], strides = [1, 1]} : vector<16x384xbf16> to vector<16x256xbf16>
    %8 = vector.extract_strided_slice %6 {offsets = [0, 91], sizes = [16, 256], strides = [1, 1]} : vector<16x384xbf16> to vector<16x256xbf16>
    %9 = vector.extract_strided_slice %6 {offsets = [0, 92], sizes = [16, 256], strides = [1, 1]} : vector<16x384xbf16> to vector<16x256xbf16>
    %10 = vector.extract_strided_slice %6 {offsets = [0, 108], sizes = [16, 256], strides = [1, 1]} : vector<16x384xbf16> to vector<16x256xbf16>
    %11 = vector.extract_strided_slice %6 {offsets = [0, 109], sizes = [16, 256], strides = [1, 1]} : vector<16x384xbf16> to vector<16x256xbf16>
    %12 = vector.extract_strided_slice %6 {offsets = [0, 110], sizes = [16, 256], strides = [1, 1]} : vector<16x384xbf16> to vector<16x256xbf16>
    %13 = vector.extract_strided_slice %6 {offsets = [0, 126], sizes = [16, 256], strides = [1, 1]} : vector<16x384xbf16> to vector<16x256xbf16>
    %14 = vector.extract_strided_slice %6 {offsets = [0, 127], sizes = [16, 256], strides = [1, 1]} : vector<16x384xbf16> to vector<16x256xbf16>
    %15 = vector.extract_strided_slice %6 {offsets = [0, 128], sizes = [16, 256], strides = [1, 1]} : vector<16x384xbf16> to vector<16x256xbf16>
    %16 = tpu.concatenate %7, %8, %9, %10, %11, %12, %13, %14, %15 in 0 : vector<16x256xbf16>, vector<16x256xbf16>, vector<16x256xbf16>, vector<16x256xbf16>, vector<16x256xbf16>, vector<16x256xbf16>, vector<16x256xbf16>, vector<16x256xbf16>, vector<16x256xbf16> -> vector<144x256xbf16>
    %c0_5 = arith.constant 0 : index
    %c0_6 = arith.constant 0 : index
    %c0_7 = arith.constant 0 : index
    %17 = vector.load %arg2[%c0_5, %c0_6, %c0_7] : memref<1x4x144xbf16, #tpu.memory_space<vmem>>, vector<1x4x144xbf16>
    %18 = vector.shape_cast %17 : vector<1x4x144xbf16> to vector<4x144xbf16>
    %cst = arith.constant dense<0.000000e+00> : vector<4x256xf32>
    %19 = tpu.matmul %18, %16, %cst {dimension_numbers = #tpu.dot_dimension_numbers<[1], [0], [0], [1], [0, 0, 1, 1], [], []>} : vector<4x144xbf16>, vector<144x256xbf16>, vector<4x256xf32> -> vector<4x256xf32>
    %20 = vector.extract_strided_slice %4 {offsets = [0, 128], sizes = [16, 128], strides = [1, 1]} : vector<16x256xbf16> to vector<16x128xbf16>
    %c0_8 = arith.constant 0 : index
    %c0_9 = arith.constant 0 : index
    %21 = vector.load %arg8[%c0_8, %c0_9] : memref<16x128xbf16, #tpu.memory_space<vmem>>, vector<16x128xbf16>
    tpu.vector_store %arg8[%c0_8, %c0_9], %20 {strides = array<i32>} : memref<16x128xbf16, #tpu.memory_space<vmem>>, vector<16x128xbf16>,
    %c0_10 = arith.constant 0 : index
    %c0_11 = arith.constant 0 : index
    %22 = memref.load %arg6[%c0_10, %c0_11] : memref<1x1xf32, #tpu.memory_space<smem>>
    %c0_12 = arith.constant 0 : index
    %c0_13 = arith.constant 0 : index
    %c0_14 = arith.constant 0 : index
    %23 = vector.load %arg4[%c0_12, %c0_13, %c0_14] : memref<1x1x256xf32, #tpu.memory_space<vmem>>, vector<1x1x256xf32>
    %24 = vector.shape_cast %23 : vector<1x1x256xf32> to vector<1x256xf32>
    %25 = vector.broadcast %22 : f32 to vector<1x256xf32>
    %26 = arith.mulf %25, %24 : vector<1x256xf32>
    %27 = vector.broadcast %26 : vector<1x256xf32> to vector<4x256xf32>
    %28 = arith.addf %19, %27 : vector<4x256xf32>
    %c0_15 = arith.constant 0 : index
    %c0_16 = arith.constant 0 : index
    %29 = vector.load %arg5[%c0_15, %c0_16] : memref<4x1xf32, #tpu.memory_space<vmem>>, vector<4x1xf32>
    %30 = vector.broadcast %29 : vector<4x1xf32> to vector<4x256xf32>
    %31 = arith.addf %28, %30 : vector<4x256xf32>
    %cst_17 = arith.constant 0.000000e+00 : f32
    %32 = vector.broadcast %cst_17 : f32 to vector<4x256xf32>
    %33 = arith.cmpf oge, %31, %32 : vector<4x256xf32>
    %cst_18 = arith.constant 2.000000e-01 : f32
    %34 = vector.broadcast %cst_18 : f32 to vector<4x256xf32>
    %35 = arith.mulf %34, %31 : vector<4x256xf32>
    %36 = arith.select %33, %31, %35 : vector<4x256xi1>, vector<4x256xf32>
    %cst_19 = arith.constant 1.41421354 : f32
    %37 = vector.broadcast %cst_19 : f32 to vector<4x256xf32>
    %38 = arith.mulf %36, %37 : vector<4x256xf32>
    %c0_20 = arith.constant 0 : index
    %c0_21 = arith.constant 0 : index
    %c0_22 = arith.constant 0 : index
    %39 = vector.load %arg7[%c0_20, %c0_21, %c0_22] : memref<1x4x256xf32, #tpu.memory_space<vmem>>, vector<1x4x256xf32>
    %40 = vector.shape_cast %39 : vector<1x4x256xf32> to vector<4x256xf32>
    %41 = vector.shape_cast %38 : vector<4x256xf32> to vector<1x4x256xf32>
    tpu.vector_store %arg7[%c0_20, %c0_21, %c0_22], %41 {strides = array<i32>} : memref<1x4x256xf32, #tpu.memory_space<vmem>>, vector<1x4x256xf32>,
    return
  }
  func.func @transform_0(%arg0: i32, %arg1: i32) -> (i32, i32, i32) {
    %c0_i32 = arith.constant 0 : i32
    %c0_i32_0 = arith.constant 0 : i32
    %c0_i32_1 = arith.constant 0 : i32
    return %arg0, %c0_i32, %c0_i32_0 : i32, i32, i32
  }
  func.func @transform_1(%arg0: i32, %arg1: i32) -> (i32, i32, i32) {
    %c0_i32 = arith.constant 0 : i32
    %c0_i32_0 = arith.constant 0 : i32
    return %arg0, %c0_i32, %arg1 : i32, i32, i32
  }
  func.func @transform_2(%arg0: i32, %arg1: i32) -> (i32, i32, i32) {
    %c0_i32 = arith.constant 0 : i32
    %c0_i32_0 = arith.constant 0 : i32
    return %arg0, %c0_i32, %arg1 : i32, i32, i32
  }
  func.func @transform_3(%arg0: i32, %arg1: i32) -> (i32, i32) {
    %c0_i32 = arith.constant 0 : i32
    %c0_i32_0 = arith.constant 0 : i32
    %c0_i32_1 = arith.constant 0 : i32
    return %c0_i32, %c0_i32_0 : i32, i32
  }
  func.func @transform_4(%arg0: i32, %arg1: i32) -> (i32, i32) {
    %c0_i32 = arith.constant 0 : i32
    %c0_i32_0 = arith.constant 0 : i32
    %c0_i32_1 = arith.constant 0 : i32
    return %c0_i32, %c0_i32_0 : i32, i32
  }
  func.func @transform_5(%arg0: i32, %arg1: i32) -> (i32, i32, i32) {
    %c0_i32 = arith.constant 0 : i32
    %c0_i32_0 = arith.constant 0 : i32
    return %arg0, %c0_i32, %arg1 : i32, i32, i32
  }
}

</mosaic_0001>

<llo_original>
// kernel: tpu_custom_call.1
$region0: #{tpu_custom_call.1}
  #allocation0 [shape = 'u32[]', space=smem, size = 0x4, offset = 0x4, fixed_abs, tag = 'smem constant byte address 0x4 - core index']
  #allocation1 [shape = 'u32[144,128]{1,0:T(1,128)}', space=vmem, size = 0x12000, scoped, tag = 'internal scratch']
  #allocation2 [shape = 'bf16[16,128]{1,0:T(8,128)(2,1)}', space=vmem, size = 0x1000, scoped, tag = 'scratch operand']
  #allocation3 [shape = 'f32[1,1]{1,0:T(1,128)S(6)}', space=smem, size = 0x200, scoped, tag = 'scoped memory for tpu_custom_call.1']
  %s0 = inlined_call_operand.hbm [shape: bf16[2,4,144], index: 0, kind: input, shape index: {}]
  %s1 = inlined_call_operand.hbm [shape: bf16[2,16,512], index: 1, kind: input, shape index: {}]
  %s2 = inlined_call_operand.vmem [shape: f32[2,1,512], index: 2, kind: input, shape index: {}]
  %s3 = inlined_call_operand.vmem [shape: f32[4,1], index: 3, kind: input, shape index: {}]
  %s4 = inlined_call_operand.<no memory space> [shape: f32[1,1], index: 4, kind: input, shape index: {}]
  %s5 = inlined_call_operand.hbm [shape: f32[2,4,512], index: 5, kind: output, shape index: {}]
  %s6 = sld [smem:[#allocation0]]
  $region65: #{tpu_custom_call.1} parent=0
    _
  %s8 = ssub.s32 1, %s6
  %s9 = scalar_select 0, %s8, %s6
  %10 = sst [smem:[#allocation3]] %s4
  $region1: #{tpu_custom_call.1} parent=0
    #allocation4 [shape = 'u8[4096]{0}', space=vmem, size = 0x1000, scoped, tag = 'input window, operand 0']
    #allocation5 [shape = 's32[2]{0}', space=sflag, size = 0x8, scoped, tag = 'scoped memory for tpu_custom_call.1']
    #allocation6 [shape = 's32[2]{0}', space=sflag, size = 0x8, scoped, tag = 'scoped memory for tpu_custom_call.1']
    #allocation7 [shape = 'u8[16384]{0}', space=vmem, size = 0x4000, scoped, tag = 'input window, operand 1']
    #allocation8 [shape = 's32[2]{0}', space=sflag, size = 0x8, scoped, tag = 'scoped memory for tpu_custom_call.1']
    #allocation9 [shape = 'u8[8192]{0}', space=vmem, size = 0x2000, scoped, tag = 'output window, operand 0']
    %11 = vsyncpa [#allocation5], 0
    %s12 = scalar_lea.sflag [#allocation5], 1
    %13 = vsyncpa %s12, 0
    %14 = vsyncpa [#allocation8], 0
    %s15 = scalar_lea.sflag [#allocation8], 1
    %16 = vsyncpa %s15, 0
    %17 = vsyncpa [#allocation6], 0
    %s18 = scalar_lea.sflag [#allocation6], 1
    %19 = vsyncpa %s18, 0
    loop: start=0, step=1, limit=6
    $region2: #{tpu_custom_call.1} parent=1 // loop_pre_header
      _
    $region3: #{tpu_custom_call.1} parent=1 // loop_header
      %s21 = sphi 0, %s25
      %p22 = scmp.ge.s32.totalorder %s21, 6
      %s28 = sphi 0, %s40
      %s29 = sphi 0, %s36
      %s30 = sphi 0, %s28
      %s31 = sphi 0, %s29
      %s32 = sphi 0, %s30
      %s33 = sphi 0, %s31
      %s43 = sphi 0, %s45
      %s46 = sphi 0, %s43
      %s47 = sphi 0, %s46
      %s63 = sphi 0, %s47
      %s71 = sphi 0, %s73
      %s74 = sphi 0, %s71
      %s75 = sphi 0, %s74
      %s91 = sphi 0, %s75
      %s99 = sphi 0, %s101
      %s102 = sphi 0, %s99
      %s103 = sphi 0, %s102
      %s119 = sphi 0, %s103
      %s123 = sphi 0, %s123
      %s125 = sphi 0, %s123
      %s126 = sphi 0, %s125
      %s140 = sphi 0, %s126
      %s144 = sphi 0, %s144
      %s146 = sphi 0, %s144
      %s147 = sphi 0, %s146
      %s161 = sphi 0, %s147
      %s169 = sphi 0, %s171
      %s172 = sphi 0, %s169
      %s173 = sphi 0, %s172
      %s189 = sphi 0, %s173
    $region4: #{tpu_custom_call.1} parent=1 // loop_header_branch
      %24 = sbr.rel (%p22) target = $region8
    $region5: #{tpu_custom_call.1} parent=1 // loop_body
      %s26 = ssub.s32 %s21, 1
      %s27 = ssub.s32 %s21, 2
      %s34 = sadd.s32 1, %s29
      %p35 = scmp.ge.s32.totalorder %s34, 2
      %s36 = scalar_select %p35, 0, %s34
      %s37 = sadd.s32 1, %s28
      %s38 = scalar_select %p35, %s37, %s28
      %p39 = scmp.ge.s32.totalorder %s38, 2
      %s40 = scalar_select %p39, 0, %s38
      %s41 = ssub.s32 %s28, %s40
      %p42 = scmp.eq.s32.totalorder %s41, 0
      %s44 = sadd.s32 %s43, 1
      %s45 = scalar_select %p42, %s43, %s44
      %p48 = pneg %p42
      %p49 = scmp.eq.s32.totalorder %s21, 3
      %p50 = por %p48, %p49
      %p51 = scmp.ne.s32.totalorder %s43, %s46
      %p52 = scmp.eq.s32.totalorder %s21, 0
      %p53 = por %p51, %p52
      %p54 = scmp.ne.s32.totalorder %s43, %s46
      %p55 = scmp.eq.s32.totalorder %s26, 3
      %p56 = por %p54, %p55
      %p57 = scmp.ne.s32.totalorder %s46, %s47
      %p58 = scmp.eq.s32.totalorder %s26, 0
      %p59 = por %p57, %p58
      %p60 = scmp.ne.s32.totalorder %s46, %s47
      %p61 = scmp.eq.s32.totalorder %s27, 3
      %p62 = por %p60, %p61
      %p64 = scmp.ne.s32.totalorder %s47, %s63
      %p65 = scmp.eq.s32.totalorder %s27, 0
      %p66 = por %p64, %p65
      %s67 = ssub.s32 %s28, %s40
      %s68 = ssub.s32 %s29, %s36
      %s69 = sor.u32 %s67, %s68
      %p70 = scmp.eq.s32.totalorder %s69, 0
      %s72 = sadd.s32 %s71, 1
      %s73 = scalar_select %p70, %s71, %s72
      %p76 = pneg %p70
      %p77 = scmp.eq.s32.totalorder %s21, 3
      %p78 = por %p76, %p77
      %p79 = scmp.ne.s32.totalorder %s71, %s74
      %p80 = scmp.eq.s32.totalorder %s21, 0
      %p81 = por %p79, %p80
      %p82 = scmp.ne.s32.totalorder %s71, %s74
      %p83 = scmp.eq.s32.totalorder %s26, 3
      %p84 = por %p82, %p83
      %p85 = scmp.ne.s32.totalorder %s74, %s75
      %p86 = scmp.eq.s32.totalorder %s26, 0
      %p87 = por %p85, %p86
      %p88 = scmp.ne.s32.totalorder %s74, %s75
      %p89 = scmp.eq.s32.totalorder %s27, 3
      %p90 = por %p88, %p89
      %p92 = scmp.ne.s32.totalorder %s75, %s91
      %p93 = scmp.eq.s32.totalorder %s27, 0
      %p94 = por %p92, %p93
      %s95 = ssub.s32 %s28, %s40
      %s96 = ssub.s32 %s29, %s36
      %s97 = sor.u32 %s95, %s96
      %p98 = scmp.eq.s32.totalorder %s97, 0
      %s100 = sadd.s32 %s99, 1
      %s101 = scalar_select %p98, %s99, %s100
      %p104 = pneg %p98
      %p105 = scmp.eq.s32.totalorder %s21, 3
      %p106 = por %p104, %p105
      %p107 = scmp.ne.s32.totalorder %s99, %s102
      %p108 = scmp.eq.s32.totalorder %s21, 0
      %p109 = por %p107, %p108
      %p110 = scmp.ne.s32.totalorder %s99, %s102
      %p111 = scmp.eq.s32.totalorder %s26, 3
      %p112 = por %p110, %p111
      %p113 = scmp.ne.s32.totalorder %s102, %s103
      %p114 = scmp.eq.s32.totalorder %s26, 0
      %p115 = por %p113, %p114
      %p116 = scmp.ne.s32.totalorder %s102, %s103
      %p117 = scmp.eq.s32.totalorder %s27, 3
      %p118 = por %p116, %p117
      %p120 = scmp.ne.s32.totalorder %s103, %s119
      %p121 = scmp.eq.s32.totalorder %s27, 0
      %p122 = por %p120, %p121
      %s124 = sadd.s32 %s123, 1
      %p127 = scmp.eq.s32.totalorder %s21, 3
      %p128 = scmp.ne.s32.totalorder %s123, %s125
      %p129 = scmp.eq.s32.totalorder %s21, 0
      %p130 = por %p128, %p129
      %p131 = scmp.ne.s32.totalorder %s123, %s125
      %p132 = scmp.eq.s32.totalorder %s26, 3
      %p133 = por %p131, %p132
      %p134 = scmp.ne.s32.totalorder %s125, %s126
      %p135 = scmp.eq.s32.totalorder %s26, 0
      %p136 = por %p134, %p135
      %p137 = scmp.ne.s32.totalorder %s125, %s126
      %p138 = scmp.eq.s32.totalorder %s27, 3
      %p139 = por %p137, %p138
      %p141 = scmp.ne.s32.totalorder %s126, %s140
      %p142 = scmp.eq.s32.totalorder %s27, 0
      %p143 = por %p141, %p142
      %s145 = sadd.s32 %s144, 1
      %p148 = scmp.eq.s32.totalorder %s21, 3
      %p149 = scmp.ne.s32.totalorder %s144, %s146
      %p150 = scmp.eq.s32.totalorder %s21, 0
      %p151 = por %p149, %p150
      %p152 = scmp.ne.s32.totalorder %s144, %s146
      %p153 = scmp.eq.s32.totalorder %s26, 3
      %p154 = por %p152, %p153
      %p155 = scmp.ne.s32.totalorder %s146, %s147
      %p156 = scmp.eq.s32.totalorder %s26, 0
      %p157 = por %p155, %p156
      %p158 = scmp.ne.s32.totalorder %s146, %s147
      %p159 = scmp.eq.s32.totalorder %s27, 3
      %p160 = por %p158, %p159
      %p162 = scmp.ne.s32.totalorder %s147, %s161
      %p163 = scmp.eq.s32.totalorder %s27, 0
      %p164 = por %p162, %p163
      %s165 = ssub.s32 %s28, %s40
      %s166 = ssub.s32 %s29, %s36
      %s167 = sor.u32 %s165, %s166
      %p168 = scmp.eq.s32.totalorder %s167, 0
      %s170 = sadd.s32 %s169, 1
      %s171 = scalar_select %p168, %s169, %s170
      %p174 = pneg %p168
      %p175 = scmp.eq.s32.totalorder %s21, 3
      %p176 = por %p174, %p175
      %p177 = scmp.ne.s32.totalorder %s169, %s172
      %p178 = scmp.eq.s32.totalorder %s21, 0
      %p179 = por %p177, %p178
      %p180 = scmp.ne.s32.totalorder %s169, %s172
      %p181 = scmp.eq.s32.totalorder %s26, 3
      %p182 = por %p180, %p181
      %p183 = scmp.ne.s32.totalorder %s172, %s173
      %p184 = scmp.eq.s32.totalorder %s26, 0
      %p185 = por %p183, %p184
      %p186 = scmp.ne.s32.totalorder %s172, %s173
      %p187 = scmp.eq.s32.totalorder %s27, 3
      %p188 = por %p186, %p187
      %p190 = scmp.ne.s32.totalorder %s173, %s189
      %p191 = scmp.eq.s32.totalorder %s27, 0
      %p192 = por %p190, %p191
      %p193 = scmp.le.s32.totalorder 1, %s21
      %p194 = scmp.lt.s32.totalorder %s21, 5
      %p195 = pnand %p193, %p194
      %p196 = pneg %p195
      // Predicated region
      $region9: #{tpu_custom_call.1} parent=5 // pred_check
        _
      $region10: #{tpu_custom_call.1} parent=5 // pred_check_branch
        %198 = sbr.rel (%p195) target = $region12
      $region11: #{tpu_custom_call.1} parent=5 // pred_region
        %s199 = ssub.s32 %s21, 1
        // Predicated region
        $region13: #{tpu_custom_call.1} parent=11 // pred_check
          %p200 = pneg %p136
        $region14: #{tpu_custom_call.1} parent=11 // pred_check_branch
          %202 = sbr.rel (%p200) target = $region16
        $region15: #{tpu_custom_call.1} parent=11 // pred_region
          _
        $region16: #{tpu_custom_call.1} parent=11 // pred_fallthru
          _
        // Predicated region
        $region17: #{tpu_custom_call.1} parent=11 // pred_check
          %p203 = pneg %p157
        $region18: #{tpu_custom_call.1} parent=11 // pred_check_branch
          %205 = sbr.rel (%p203) target = $region20
        $region19: #{tpu_custom_call.1} parent=11 // pred_region
          _
        $region20: #{tpu_custom_call.1} parent=11 // pred_fallthru
          _
      $region12: #{tpu_custom_call.1} parent=5 // pred_fallthru
        _
      %p206 = scmp.lt.s32.totalorder %s21, 4
      // Predicated region
      $region21: #{tpu_custom_call.1} parent=5 // pred_check
        %p207 = pneg %p206
      $region22: #{tpu_custom_call.1} parent=5 // pred_check_branch
        %209 = sbr.rel (%p207) target = $region24
      $region23: #{tpu_custom_call.1} parent=5 // pred_region
        // Predicated region
        $region25: #{tpu_custom_call.1} parent=23 // pred_check
          %p210 = pneg %p53
        $region26: #{tpu_custom_call.1} parent=23 // pred_check_branch
          %212 = sbr.rel (%p210) target = $region28
        $region27: #{tpu_custom_call.1} parent=23 // pred_region
          %s213 = sand.u32 %s43, 1
          %s214 = scalar_lea.sflag [#allocation5], %s213
          %s215 = sand.u32 %s43, 1
          %s216 = smul.addr %s215, 4
          %s217 = scalar_lea.vmem [#allocation4], %s216
          %s219 = ssub.s32 64, 64
          %220 = vsyncadd %s214, %s219
          %s221 = smul.addr %s28, 2
          %s222 = smul.addr %s221, 32
          %s223 = scalar_lea.hbm %s0, %s222
          %s225 = sshll.u32 %s217, 4
          %s226 = int_to_ptr.vmem [resolvable:$true] %s225
          %228 = dma.hbm_to_vmem [thread:$0]  %s223, 64, %s226, %s214
        $region28: #{tpu_custom_call.1} parent=23 // pred_fallthru
          _
        // Predicated region
        $region29: #{tpu_custom_call.1} parent=23 // pred_check
          %p229 = pneg %p81
        $region30: #{tpu_custom_call.1} parent=23 // pred_check_branch
          %231 = sbr.rel (%p229) target = $region32
        $region31: #{tpu_custom_call.1} parent=23 // pred_region
          %s232 = sand.u32 %s71, 1
          %s233 = scalar_lea.sflag [#allocation8], %s232
          %s234 = sand.u32 %s71, 1
          %s235 = smul.addr %s234, 16
          %s236 = scalar_lea.vmem [#allocation7], %s235
          %s237 = smul.u32 2, %s29
          %s239 = ssub.s32 256, 256
          %240 = vsyncadd %s233, %s239
          %s241 = smul.addr %s28, 8
          %s242 = sadd.s32 %s237, %s241
          %s243 = smul.addr %s242, 64
          %s244 = scalar_lea.hbm %s1, %s243
          %s245 = sshll.u32 %s236, 4
          %s246 = int_to_ptr.vmem [resolvable:$true] %s245
          %251 = dma.hbm_to_vmem [thread:$0]  %s244, 256, %s246, %s233, 256, 128, 8
        $region32: #{tpu_custom_call.1} parent=23 // pred_fallthru
          _
        // Predicated region
        $region33: #{tpu_custom_call.1} parent=23 // pred_check
          %p252 = pneg %p109
        $region34: #{tpu_custom_call.1} parent=23 // pred_check_branch
          %254 = sbr.rel (%p252) target = $region36
        $region35: #{tpu_custom_call.1} parent=23 // pred_region
          %s255 = smul.u32 2, %s29
          %p256 = scmp.lt.s32.totalorder %s28, 1
          %s257 = scalar_select %p256, %s28, 1
          %p258 = scmp.lt.s32.totalorder %s255, 3
          %s259 = scalar_select %p258, %s255, 3
          %s260 = smul.addr %s257, 4
          %s261 = sadd.s32 %s259, %s260
          %s262 = scalar_lea.vmem %s2, %s261
          %s263 = smul.u32 2, %s29
        $region36: #{tpu_custom_call.1} parent=23 // pred_fallthru
          _
      $region24: #{tpu_custom_call.1} parent=5 // pred_fallthru
        _
      %p264 = scmp.le.s32.totalorder 1, %s21
      %p265 = scmp.lt.s32.totalorder %s21, 5
      %p266 = pnand %p264, %p265
      %p267 = pneg %p266
      // Predicated region
      $region37: #{tpu_custom_call.1} parent=5 // pred_check
        _
      $region38: #{tpu_custom_call.1} parent=5 // pred_check_branch
        %269 = sbr.rel (%p266) target = $region40
      $region39: #{tpu_custom_call.1} parent=5 // pred_region
        %s270 = ssub.s32 %s21, 1
        %s271 = sand.u32 %s46, 1
        %s272 = scalar_lea.sflag [#allocation5], %s271
        %s273 = sand.u32 %s46, 1
        %s274 = smul.addr %s273, 4
        %s275 = scalar_lea.vmem [#allocation4], %s274
        // Predicated region
        $region41: #{tpu_custom_call.1} parent=39 // pred_check
          %p276 = pneg %p59
        $region42: #{tpu_custom_call.1} parent=39 // pred_check_branch
          %278 = sbr.rel (%p276) target = $region44
        $region43: #{tpu_custom_call.1} parent=39 // pred_region
          %279 = dma.done %s272, 64
        $region44: #{tpu_custom_call.1} parent=39 // pred_fallthru
          _
        %s280 = sand.u32 %s74, 1
        %s281 = scalar_lea.sflag [#allocation8], %s280
        %s282 = sand.u32 %s74, 1
        %s283 = smul.addr %s282, 16
        %s284 = scalar_lea.vmem [#allocation7], %s283
        // Predicated region
        $region45: #{tpu_custom_call.1} parent=39 // pred_check
          %p285 = pneg %p87
        $region46: #{tpu_custom_call.1} parent=39 // pred_check_branch
          %287 = sbr.rel (%p285) target = $region48
        $region47: #{tpu_custom_call.1} parent=39 // pred_region
          %288 = dma.done %s281, 256
        $region48: #{tpu_custom_call.1} parent=39 // pred_fallthru
          _
        %s289 = sand.u32 %s46, 1
        %s290 = scalar_lea.sflag [#allocation5], %s289
        %s291 = sand.u32 %s46, 1
        %s292 = smul.addr %s291, 4
        %s293 = scalar_lea.vmem [#allocation4], %s292
        %p294 = pneg %p59
        %p295 = pneg %p56
        %s296 = sand.u32 %s74, 1
        %s297 = scalar_lea.sflag [#allocation8], %s296
        %s298 = sand.u32 %s74, 1
        %s299 = smul.addr %s298, 16
        %s300 = scalar_lea.vmem [#allocation7], %s299
        %p301 = pneg %p87
        %p302 = pneg %p84
        %s303 = smul.u32 2, %s31
        %p304 = scmp.lt.s32.totalorder %s30, 1
        %s305 = scalar_select %p304, %s30, 1
        %p306 = scmp.lt.s32.totalorder %s303, 3
        %s307 = scalar_select %p306, %s303, 3
        %s308 = smul.addr %s305, 4
        %s309 = sadd.s32 %s307, %s308
        %s310 = scalar_lea.vmem %s2, %s309
        %p311 = pneg %p115
        %p312 = pneg %p112
        %p313 = pneg %p136
        %p314 = pneg %p133
        %p315 = pneg %p157
        %p316 = pneg %p154
        %p317 = pneg %p185
        %p318 = pneg %p182
        %s319 = sand.u32 %s172, 1
        %s320 = scalar_lea.sflag [#allocation6], %s319
        %s321 = sand.u32 %s172, 1
        %s322 = smul.addr %s321, 8
        %s323 = scalar_lea.vmem [#allocation9], %s322
        %s324 = smul.u32 2, %s31
        %s325 = smul.u32 2, %s31
        %p326 = scmp.lt.s32.totalorder %s30, 1
        %s327 = scalar_select %p326, %s30, 1
        %p328 = scmp.lt.s32.totalorder %s325, 3
        %s329 = scalar_select %p328, %s325, 3
        %s330 = smul.addr %s327, 4
        %s331 = sadd.s32 %s329, %s330
        %s332 = scalar_lea.vmem %s2, %s331
        %s333 = smul.u32 2, %s31
        %s334 = smul.u32 2, %s31
        %p336 = scmp.eq.s32.totalorder %s31, 0
        // Predicated region
        $region49: #{tpu_custom_call.1} parent=39 // pred_check
          %p337 = pneg %p336
        $region50: #{tpu_custom_call.1} parent=39 // pred_check_branch
          %339 = sbr.rel (%p337) target = $region52
        $region51: #{tpu_custom_call.1} parent=39 // pred_region
          %340 = vst [vmem:[#allocation2] sm:$0xf] 0
          %341 = vst [vmem:[#allocation2 + $0x4] sm:$0xf] 0
        $region52: #{tpu_custom_call.1} parent=39 // pred_fallthru
          _
        %v342 = vld [vmem:[%s284] sm:$0xff]
        %v343 = vld [vmem:[%s284 + $0x8] sm:$0xff]
        %v344 = vld [vmem:[#allocation2] sm:$0xf]
        %v345 = vld [vmem:[#allocation2 + $0x4] sm:$0xf]
        %v348 = vunpack.c.l.b16 %v344
        %v349 = vunpack.c.l.b16 %v345
        %v350 = vpack.c.b16 %v349, %v348
        %v353 = vunpack.c.l.b16 %v342
        %v354 = vunpack.c.h.b16 %v342
        %v355 = vunpack.c.l.b16 %v343
        %v356 = vunpack.c.h.b16 %v343
        %v357 = vpack.c.b16 %v355, %v353
        %v358 = vpack.c.b16 %v356, %v354
        %359 = vrot.lane.b32.xlu0 %v350, 127
        %v360 = vpop.permute.xlu0 %359
        %361 = vrot.lane.b32.xlu0 %v357, 127
        %v362 = vpop.permute.xlu0 %361
        %363 = vrot.lane.b32.xlu0 %v358, 127
        %v364 = vpop.permute.xlu0 %363
        %vm365 = vcmask 1039360
        %v366 = vsel %vm365, %v360, %v362
        %v367 = vsel %vm365, %v362, %v364
        %368 = vrot.lane.b32.xlu0 %v350, 126
        %v369 = vpop.permute.xlu0 %368
        %370 = vrot.lane.b32.xlu0 %v357, 126
        %v371 = vpop.permute.xlu0 %370
        %372 = vrot.lane.b32.xlu0 %v358, 126
        %v373 = vpop.permute.xlu0 %372
        %vm374 = vcmask 1031168
        %v375 = vsel %vm374, %v369, %v371
        %v376 = vsel %vm374, %v371, %v373
        %377 = vrot.lane.b32.xlu0 %v350, 110
        %v378 = vpop.permute.xlu0 %377
        %379 = vrot.lane.b32.xlu0 %v357, 110
        %v380 = vpop.permute.xlu0 %379
        %381 = vrot.lane.b32.xlu0 %v358, 110
        %v382 = vpop.permute.xlu0 %381
        %vm383 = vcmask 900096
        %v384 = vsel %vm383, %v378, %v380
        %v385 = vsel %vm383, %v380, %v382
        %386 = vrot.lane.b32.xlu0 %v350, 109
        %v387 = vpop.permute.xlu0 %386
        %388 = vrot.lane.b32.xlu0 %v357, 109
        %v389 = vpop.permute.xlu0 %388
        %390 = vrot.lane.b32.xlu0 %v358, 109
        %v391 = vpop.permute.xlu0 %390
        %vm392 = vcmask 891904
        %v393 = vsel %vm392, %v387, %v389
        %v394 = vsel %vm392, %v389, %v391
        %395 = vrot.lane.b32.xlu0 %v350, 108
        %v396 = vpop.permute.xlu0 %395
        %397 = vrot.lane.b32.xlu0 %v357, 108
        %v398 = vpop.permute.xlu0 %397
        %399 = vrot.lane.b32.xlu0 %v358, 108
        %v400 = vpop.permute.xlu0 %399
        %vm401 = vcmask 883712
        %v402 = vsel %vm401, %v396, %v398
        %v403 = vsel %vm401, %v398, %v400
        %404 = vrot.lane.b32.xlu0 %v350, 92
        %v405 = vpop.permute.xlu0 %404
        %406 = vrot.lane.b32.xlu0 %v357, 92
        %v407 = vpop.permute.xlu0 %406
        %408 = vrot.lane.b32.xlu0 %v358, 92
        %v409 = vpop.permute.xlu0 %408
        %vm410 = vcmask 752640
        %v411 = vsel %vm410, %v405, %v407
        %v412 = vsel %vm410, %v407, %v409
        %413 = vrot.lane.b32.xlu0 %v350, 91
        %v414 = vpop.permute.xlu0 %413
        %415 = vrot.lane.b32.xlu0 %v357, 91
        %v416 = vpop.permute.xlu0 %415
        %417 = vrot.lane.b32.xlu0 %v358, 91
        %v418 = vpop.permute.xlu0 %417
        %vm419 = vcmask 744448
        %v420 = vsel %vm419, %v414, %v416
        %v421 = vsel %vm419, %v416, %v418
        %422 = vrot.lane.b32.xlu0 %v357, 90
        %v423 = vpop.permute.xlu0 %422
        %424 = vrot.lane.b32.xlu0 %v358, 90
        %v425 = vpop.permute.xlu0 %424
        %vm426 = vcmask 736256
        %v427 = vsel %vm426, %v423, %v425
        %v428 = vld [vmem:[%s275] sm:$0xf]
        %v429 = vrot.slane %v342, 4
        %v430 = vrot.slane %v343, 4
        %433 = vst [vmem:[#allocation2] sm:$0xf] %v429
        %434 = vst [vmem:[#allocation2 + $0x4] sm:$0xf] %v430
        %s435 = sld [smem:[#allocation3]]
        %v436 = vld [vmem:[%s332] sm:$0x3]
        %v437 = vstv %s435
        %v438 = vmul.f32 %v437, %v436
        %v440 = vlaneseq
        %v441 = vshrl.u32 %v440, 7
        %v442 = vsub.s32 0, %v441
        %v443 = vrot.slane %v438, %v442
        %v444 = vlaneseq
        %v445 = vshrl.u32 %v444, 7
        %v446 = vsub.s32 1, %v445
        %v447 = vrot.slane %v438, %v446
        %v452 = vunpack.c.l.s4 1983009808
        %v453 = vunpack.c.0.s8 %v452
        %v454 = vlaneseq
        %v455 = vshrl.u32 %v454, 7
        %v456 = vsub.s32 %v453, %v455
        %v457 = vrot.slane %v428, %v456
        %v458 = vcombine.high %v457, %v457
        %460 = vrot.lane.b32.xlu0 %v350, 38
        %v461 = vpop.permute.xlu0 %460
        %462 = vrot.lane.b32.xlu0 %v357, 38
        %v463 = vpop.permute.xlu0 %462
        %464 = vrot.lane.b32.xlu0 %v358, 38
        %v465 = vpop.permute.xlu0 %464
        %466 = vrot.lane.b32.xlu0 %v366, 38
        %v467 = vpop.permute.xlu0 %466
        %468 = vrot.lane.b32.xlu0 %v367, 38
        %v469 = vpop.permute.xlu0 %468
        %470 = vrot.lane.b32.xlu0 %v364, 38
        %v471 = vpop.permute.xlu0 %470
        %472 = vrot.lane.b32.xlu0 %v375, 38
        %v473 = vpop.permute.xlu0 %472
        %474 = vrot.lane.b32.xlu0 %v376, 38
        %v475 = vpop.permute.xlu0 %474
        %476 = vrot.lane.b32.xlu0 %v373, 38
        %v477 = vpop.permute.xlu0 %476
        %478 = vrot.lane.b32.xlu0 %v384, 38
        %v479 = vpop.permute.xlu0 %478
        %480 = vrot.lane.b32.xlu0 %v385, 38
        %v481 = vpop.permute.xlu0 %480
        %482 = vrot.lane.b32.xlu0 %v382, 38
        %v483 = vpop.permute.xlu0 %482
        %484 = vrot.lane.b32.xlu0 %v393, 38
        %v485 = vpop.permute.xlu0 %484
        %486 = vrot.lane.b32.xlu0 %v394, 38
        %v487 = vpop.permute.xlu0 %486
        %488 = vrot.lane.b32.xlu0 %v391, 38
        %v489 = vpop.permute.xlu0 %488
        %490 = vrot.lane.b32.xlu0 %v402, 38
        %v491 = vpop.permute.xlu0 %490
        %492 = vrot.lane.b32.xlu0 %v403, 38
        %v493 = vpop.permute.xlu0 %492
        %494 = vrot.lane.b32.xlu0 %v400, 38
        %v495 = vpop.permute.xlu0 %494
        %496 = vrot.lane.b32.xlu0 %v411, 38
        %v497 = vpop.permute.xlu0 %496
        %498 = vrot.lane.b32.xlu0 %v412, 38
        %v499 = vpop.permute.xlu0 %498
        %500 = vrot.lane.b32.xlu0 %v409, 38
        %v501 = vpop.permute.xlu0 %500
        %502 = vrot.lane.b32.xlu0 %v420, 38
        %v503 = vpop.permute.xlu0 %502
        %504 = vrot.lane.b32.xlu0 %v421, 38
        %v505 = vpop.permute.xlu0 %504
        %506 = vrot.lane.b32.xlu0 %v418, 38
        %v507 = vpop.permute.xlu0 %506
        %508 = vrot.lane.b32.xlu0 %v423, 38
        %v509 = vpop.permute.xlu0 %508
        %510 = vrot.lane.b32.xlu0 %v427, 38
        %v511 = vpop.permute.xlu0 %510
        %512 = vrot.lane.b32.xlu0 %v425, 38
        %v513 = vpop.permute.xlu0 %512
        %vm514 = vcmask 310272
        %v515 = vsel %vm514, %v461, %v463
        %v516 = vsel %vm514, %v463, %v465
        %v517 = vsel %vm514, %v467, %v469
        %v518 = vsel %vm514, %v469, %v471
        %v519 = vsel %vm514, %v473, %v475
        %v520 = vsel %vm514, %v475, %v477
        %v521 = vsel %vm514, %v479, %v481
        %v522 = vsel %vm514, %v481, %v483
        %v523 = vsel %vm514, %v485, %v487
        %v524 = vsel %vm514, %v487, %v489
        %v525 = vsel %vm514, %v491, %v493
        %v526 = vsel %vm514, %v493, %v495
        %v527 = vsel %vm514, %v497, %v499
        %v528 = vsel %vm514, %v499, %v501
        %v529 = vsel %vm514, %v503, %v505
        %v530 = vsel %vm514, %v505, %v507
        %v531 = vsel %vm514, %v509, %v511
        %v532 = vsel %vm514, %v511, %v513
        %vm551 = vcmask 130048
        %v553 = vsel %vm551, %v458, 0
        %555 = vmatprep.subr.bf16.mxu0 %v530
        %556 = vmatpush1.bf16.msra.mxu0 %v529
        %557 = vmatprep.subr.bf16.mxu0 %v528
        %558 = vmatpush1.bf16.msra.mxu0 %v527
        %559 = vmatprep.subr.bf16.mxu0 %v526
        %560 = vmatpush1.bf16.msra.mxu0 %v525
        %561 = vmatprep.subr.bf16.mxu0 %v524
        %562 = vmatpush1.bf16.msra.mxu0 %v523
        %563 = vmatprep.subr.bf16.mxu0 %v522
        %564 = vmatpush1.bf16.msra.mxu0 %v521
        %565 = vmatprep.subr.bf16.mxu0 %v520
        %566 = vmatpush1.bf16.msra.mxu0 %v519
        %567 = vmatprep.subr.bf16.mxu0 %v518
        %568 = vmatpush1.bf16.msra.mxu0 %v517
        %569 = vmatprep.subr.bf16.mxu0 %v516
        %570 = vmatpush1.bf16.msra.mxu0 %v515
        %571 = vmatprep.subr.bf16.mxu0 0
        %572 = vmatpush2.bf16.msra.mxu0 0
        %573 = vmatprep.subr.bf16.mxu0 0
        %574 = vmatpush2.bf16.msra.mxu0 0
        %575 = vmatprep.subr.bf16.mxu0 0
        %576 = vmatpush2.bf16.msra.mxu0 0
        %577 = vmatprep.subr.bf16.mxu0 0
        %578 = vmatpush2.bf16.msra.mxu0 0
        %579 = vmatprep.subr.bf16.mxu0 0
        %580 = vmatpush2.bf16.msra.mxu0 0
        %581 = vmatprep.subr.bf16.mxu0 0
        %582 = vmatpush2.bf16.msra.mxu0 0
        %583 = vmatprep.subr.bf16.mxu0 0
        %584 = vmatpush2.bf16.msra.mxu0 0
        %585 = vmatprep.subr.bf16.mxu0 %v532
        %586 = vmatpush2.bf16.msra.mxu0 %v531
        %587 = vmatprep.mubr.bf16.mxu0 %v553
        %588 = vmatmul.mubr.bf16.gmra.mxu0 %v457
        %v589 = vpop.f32.mrf.mxu0
        %v590 = vadd.f32 %v443, %v589
        %v591 = vpop.f32.mrf.mxu0
        %v592 = vadd.f32 %v447, %v591
        %v593 = vpop.f32.mrf.mxu0
        %v594 = vpop.f32.mrf.mxu0
        %595 = vdwg.mxu0
        %v596 = vld [vmem:[%s3] sm:$0xf]
        %598 = vset.pattern.permute.xlu0 0
        %599 = vperm.xlu0 %598, %v596
        %v600 = vpop.permute.xlu0 %599
        %v602 = vadd.f32 %v590, %v600
        %v603 = vadd.f32 %v592, %v600
        %vm604 = vcmp.ge.f32.partialorder %v602, 0.0
        %vm605 = vcmp.ge.f32.partialorder %v603, 0.0
        %v606 = vmul.f32 %v602, 0.2
        %v607 = vmul.f32 %v603, 0.2
        %v608 = vsel %vm604, %v602, %v606
        %v609 = vsel %vm605, %v603, %v607
        %v610 = vmul.f32 %v608, 1.4142135
        %v611 = vmul.f32 %v609, 1.4142135
        %v614 = vcombine.low %v610, %v611
        %616 = vst [vmem:[%s323] sm:$0xff] %v614
        %s617 = sand.u32 %s172, 1
        %s618 = scalar_lea.sflag [#allocation6], %s617
        %s619 = sand.u32 %s172, 1
        %s620 = smul.addr %s619, 8
        %s621 = scalar_lea.vmem [#allocation9], %s620
        // Predicated region
        $region53: #{tpu_custom_call.1} parent=39 // pred_check
          %p622 = pneg %p182
        $region54: #{tpu_custom_call.1} parent=39 // pred_check_branch
          %624 = sbr.rel (%p622) target = $region56
        $region55: #{tpu_custom_call.1} parent=39 // pred_region
          %s625 = smul.u32 2, %s31
          %s627 = ssub.s32 128, 128
          %628 = vsyncadd %s618, %s627
          %s629 = smul.addr %s30, 4
          %s630 = sadd.s32 %s625, %s629
          %s631 = smul.addr %s630, 64
          %s632 = scalar_lea.hbm %s5, %s631
          %s634 = sshll.u32 %s621, 4
          %s635 = int_to_ptr.vmem [resolvable:$true] %s634
          %637 = dma.vmem_to_hbm [thread:$0]  %s635, 128, %s632, %s618
        $region56: #{tpu_custom_call.1} parent=39 // pred_fallthru
          _
      $region40: #{tpu_custom_call.1} parent=5 // pred_fallthru
        _
      %p638 = scmp.le.s32.totalorder 2, %s21
      // Predicated region
      $region57: #{tpu_custom_call.1} parent=5 // pred_check
        %p639 = pneg %p638
      $region58: #{tpu_custom_call.1} parent=5 // pred_check_branch
        %641 = sbr.rel (%p639) target = $region60
      $region59: #{tpu_custom_call.1} parent=5 // pred_region
        %s642 = ssub.s32 %s21, 2
        // Predicated region
        $region61: #{tpu_custom_call.1} parent=59 // pred_check
          %p643 = pneg %p188
        $region62: #{tpu_custom_call.1} parent=59 // pred_check_branch
          %645 = sbr.rel (%p643) target = $region64
        $region63: #{tpu_custom_call.1} parent=59 // pred_region
          %s646 = sand.u32 %s173, 1
          %s647 = scalar_lea.sflag [#allocation6], %s646
          %s648 = sand.u32 %s173, 1
          %s649 = smul.addr %s648, 8
          %s650 = scalar_lea.vmem [#allocation9], %s649
          %651 = dma.done %s647, 128
        $region64: #{tpu_custom_call.1} parent=59 // pred_fallthru
          _
      $region60: #{tpu_custom_call.1} parent=5 // pred_fallthru
        _
    $region6: #{tpu_custom_call.1} parent=1 // loop_footer
      %s25 = sadd.s32 1, %s21
    $region7: #{tpu_custom_call.1} parent=1 // loop_footer_branch
      %20 = sbr.rel target = $region3
    $region8: #{tpu_custom_call.1} parent=1 // loop_exit
      _
    %652 = vsyncpa [#allocation5], 1
    %s653 = scalar_lea.sflag [#allocation5], 1
    %654 = vsyncpa %s653, 1
    %655 = vsyncpa [#allocation8], 1
    %s656 = scalar_lea.sflag [#allocation8], 1
    %657 = vsyncpa %s656, 1
    %658 = vsyncpa [#allocation6], 1
    %s659 = scalar_lea.sflag [#allocation6], 1
    %660 = vsyncpa %s659, 1

</llo_original>
